<compile_context>
chip_gen: v5e
topology: v5e:2x2
jax: 0.10.0
libtpu: 0.0.40
codegen_flags: <defaults>
</compile_context>

<pallas_src>
import jax
import jax.numpy as jnp
from jax.experimental import pallas as pl
from jax.experimental.pallas import tpu as pltpu


# --------------------------------------------------------------------------
# Kernel factory: fused chain of `num_nonfinal` non-final stages followed by
# an optional final (sigmoid) stage. Params arrive packed as (bm, P) f32.
# --------------------------------------------------------------------------
def _make_chain_kernel(num_nonfinal, has_final):
    def kernel(x_ref, p_ref, o_ref):
        t = x_ref[...].astype(jnp.float32)            # (bm, bn)
        p = p_ref[...].astype(jnp.float32)            # (bm, P)
        col = 0
        for _ in range(num_nonfinal):
            sph = p[:, col:col + 1]                   # softplus(h), (bm, 1)
            b = p[:, col + 1:col + 2]                 # b
            ta = p[:, col + 2:col + 3]                # tanh(a)
            col += 3
            t = t * sph + b                           # implicit lane broadcast
            t = t + jnp.tanh(t) * ta
        if has_final:
            sph = p[:, col:col + 1]
            b = p[:, col + 1:col + 2]
            t = t * sph + b
            t = 0.5 * jnp.tanh(0.5 * t) + 0.5         # == sigmoid(t), 1 EUP op
        o_ref[...] = t.astype(o_ref.dtype)
    return kernel


# --------------------------------------------------------------------------
# Block-size helpers
# --------------------------------------------------------------------------
def _sublane_align(dtype):
    # f32 -> 8, bf16 -> 16, int8/fp8 -> 32 rows per sublane tile.
    itemsize = jnp.dtype(dtype).itemsize
    return max(8, 32 // itemsize)


def _round_down(v, align):
    return max(align, (v // align) * align)


def _pick_block(dim, target, align):
    """Full dim if small, otherwise an align-multiple tile <= target."""
    if dim <= target:
        return dim                       # full extent is always a legal block
    return _round_down(target, align)


# --------------------------------------------------------------------------
# Fused-chain wrapper
# --------------------------------------------------------------------------
def bitparm_chain_forward(x, stages, *,
                          row_block_target=256, col_block_target=2048):
    """Apply a chain of Bitparm stages to x in a single fused pass.

    x      : (N, C, H, W) array (f32 or bf16).
    stages : sequence of (h, b, a_or_None, final) tuples, h/b/a of shape
             (1, C, 1, 1). Only the last stage may have final=True.
    """
    N, C, H, W = x.shape
    rows, cols = N * C, H * W

    # --- hoist per-channel transcendentals & pack params -> (rows, P) -------
    num_nonfinal = 0
    has_final = False
    p_cols = []
    for idx, (h, b, a, final) in enumerate(stages):
        assert h.shape == (1, C, 1, 1) and b.shape == (1, C, 1, 1)
        sph = jax.nn.softplus(h.astype(jnp.float32)).reshape(C)
        bb = b.astype(jnp.float32).reshape(C)
        if final:
            assert idx == len(stages) - 1, "only the last stage may be final"
            has_final = True
            p_cols += [sph, bb]
        else:
            assert a is not None and a.shape == (1, C, 1, 1)
            num_nonfinal += 1
            ta = jnp.tanh(a.astype(jnp.float32)).reshape(C)
            p_cols += [sph, bb, ta]
    P = len(p_cols)
    params_c = jnp.stack(p_cols, axis=-1)                       # (C, P)
    params = jnp.broadcast_to(params_c[None], (N, C, P)).reshape(rows, P)

    # --- lane-dense 2-D view of x -------------------------------------------
    x2 = x.reshape(rows, cols)

    # --- tiling (bounded ~2 MiB f32 blocks; dtype-aware sublane alignment) ---
    align_r = _sublane_align(x.dtype)
    bm = _pick_block(rows, row_block_target, align_r)
    bn = _pick_block(cols, col_block_target, 128)

    # v7x has 2 TensorCores sharded over "parallel" grid axes: make sure the
    # grid has >= 2 steps when the input is big enough to split.
    if pl.cdiv(rows, bm) == 1 and pl.cdiv(cols, bn) == 1:
        if rows >= 2 * align_r:
            bm = _round_down(rows // 2, align_r)
        elif cols >= 2 * 128:
            bn = _round_down(cols // 2, 128)

    grid = (pl.cdiv(rows, bm), pl.cdiv(cols, bn))

    kernel = _make_chain_kernel(num_nonfinal, has_final)
    out2 = pl.pallas_call(
        kernel,
        out_shape=jax.ShapeDtypeStruct((rows, cols), x.dtype),
        grid_spec=pltpu.PrefetchScalarGridSpec(
            num_scalar_prefetch=0,
            grid=grid,
            in_specs=[
                pl.BlockSpec((bm, bn), lambda i, j: (i, j)),
                pl.BlockSpec((bm, P), lambda i, j: (i, 0)),
            ],
            out_specs=pl.BlockSpec((bm, bn), lambda i, j: (i, j)),
        ),
        compiler_params=pltpu.CompilerParams(
            dimension_semantics=("parallel", "parallel")),
    )(x2, params)

    return out2.reshape(N, C, H, W)


def bitparm_forward(x, h, b, a=None, *, final=False, **kw):
    """Single Bitparm stage (matches the PyTorch module's forward)."""
    return bitparm_chain_forward(x, [(h, b, a, final)], **kw)


# --------------------------------------------------------------------------
# Pure-JAX reference
# --------------------------------------------------------------------------
def _bitparm_ref(x, h, b, a=None, *, final=False):
    sph = jax.nn.softplus(h.astype(jnp.float32))
    t = x.astype(jnp.float32) * sph + b.astype(jnp.float32)
    if final:
        return jax.nn.sigmoid(t)
    return t + jnp.tanh(t) * jnp.tanh(a.astype(jnp.float32))


def _chain_ref(x, stages):
    t = x.astype(jnp.float32)
    for (h, b, a, final) in stages:
        t = _bitparm_ref(t, h, b, a, final=final)
    return t


if __name__ == "__main__":
    key = jax.random.PRNGKey(0)
    kx, k1, k2, k3, k4, k5, k6, k7, k8 = jax.random.split(key, 9)

    N, C, H, W = 2, 4, 16, 16
    x = jax.random.normal(kx, (N, C, H, W), dtype=jnp.float32)

    def mkparam(k):
        # torch.nn.init.normal_(..., mean=0, std=0.01) on shape (1, C, 1, 1)
        return 0.01 * jax.random.normal(k, (1, C, 1, 1), dtype=jnp.float32)

    h1, b1, a1 = mkparam(k1), mkparam(k2), mkparam(k3)
    h2, b2, a2 = mkparam(k4), mkparam(k5), mkparam(k6)
    h3, b3 = mkparam(k7), mkparam(k8)

    # 1) single non-final stage, f32
    out = jax.block_until_ready(bitparm_forward(x, h1, b1, a1, final=False))
    ref = _bitparm_ref(x, h1, b1, a1, final=False)
    assert out.shape == (N, C, H, W)
    assert jnp.allclose(out, ref, atol=1e-5, rtol=1e-5)

    # 2) single final stage, f32
    out_f = jax.block_until_ready(bitparm_forward(x, h3, b3, final=True))
    ref_f = _bitparm_ref(x, h3, b3, final=True)
    assert jnp.allclose(out_f, ref_f, atol=1e-5, rtol=1e-5)

    # 3) fused 3-stage chain (2 non-final + final) in one pallas_call
    stages = [(h1, b1, a1, False), (h2, b2, a2, False), (h3, b3, None, True)]
    out_c = jax.block_until_ready(bitparm_chain_forward(x, stages))
    ref_c = _chain_ref(x, stages)
    assert jnp.allclose(out_c, ref_c, atol=1e-5, rtol=1e-5)

    # 4) bf16 I/O path (f32 compute inside the kernel), relaxed tolerance
    x_bf16 = x.astype(jnp.bfloat16)
    out_bf = jax.block_until_ready(bitparm_forward(x_bf16, h1, b1, a1,
                                                   final=False))
    ref_bf = _bitparm_ref(x_bf16, h1, b1, a1, final=False)
    assert out_bf.dtype == jnp.bfloat16
    assert jnp.allclose(out_bf.astype(jnp.float32), ref_bf,
                        atol=3e-2, rtol=3e-2)

    print("KERNEL_OK")
</pallas_src>

<mosaic_0001>
module attributes {stable_mosaic.version = 11 : i64} {
  func.func @kernel(%arg0: i32, %arg1: i32, %arg2: memref<8x128xf32, #tpu.memory_space<vmem>>, %arg3: memref<8x3xf32, #tpu.memory_space<vmem>>, %arg4: memref<8x128xf32, #tpu.memory_space<vmem>>) attributes {dimension_semantics = [#tpu.dimension_semantics<parallel>, #tpu.dimension_semantics<parallel>], iteration_bounds = array<i64: 1, 2>, scalar_prefetch = 0 : i64, scratch_operands = 0 : i64, tpu.core_type = #tpu.core_type<tc>, window_params = [{transform_indices = @transform_0, window_bounds = array<i64: 8, 128>}, {transform_indices = @transform_1, window_bounds = array<i64: 8, 3>}, {transform_indices = @transform_2, window_bounds = array<i64: 8, 128>}]} {
    %c0 = arith.constant 0 : index
    %c0_0 = arith.constant 0 : index
    %0 = vector.load %arg2[%c0, %c0_0] : memref<8x128xf32, #tpu.memory_space<vmem>>, vector<8x128xf32>
    %c0_1 = arith.constant 0 : index
    %c0_2 = arith.constant 0 : index
    %1 = vector.load %arg3[%c0_1, %c0_2] : memref<8x3xf32, #tpu.memory_space<vmem>>, vector<8x3xf32>
    %2 = vector.extract_strided_slice %1 {offsets = [0, 0], sizes = [8, 1], strides = [1, 1]} : vector<8x3xf32> to vector<8x1xf32>
    %3 = vector.extract_strided_slice %1 {offsets = [0, 1], sizes = [8, 1], strides = [1, 1]} : vector<8x3xf32> to vector<8x1xf32>
    %4 = vector.extract_strided_slice %1 {offsets = [0, 2], sizes = [8, 1], strides = [1, 1]} : vector<8x3xf32> to vector<8x1xf32>
    %5 = vector.broadcast %2 : vector<8x1xf32> to vector<8x128xf32>
    %6 = arith.mulf %0, %5 : vector<8x128xf32>
    %7 = vector.broadcast %3 : vector<8x1xf32> to vector<8x128xf32>
    %8 = arith.addf %6, %7 : vector<8x128xf32>
    %9 = math.tanh %8 : vector<8x128xf32>
    %10 = vector.broadcast %4 : vector<8x1xf32> to vector<8x128xf32>
    %11 = arith.mulf %9, %10 : vector<8x128xf32>
    %12 = arith.addf %8, %11 : vector<8x128xf32>
    %c0_3 = arith.constant 0 : index
    %c0_4 = arith.constant 0 : index
    %13 = vector.load %arg4[%c0_3, %c0_4] : memref<8x128xf32, #tpu.memory_space<vmem>>, vector<8x128xf32>
    tpu.vector_store %arg4[%c0_3, %c0_4], %12 {strides = array<i32>} : memref<8x128xf32, #tpu.memory_space<vmem>>, vector<8x128xf32>,
    return
  }
  func.func @transform_0(%arg0: i32, %arg1: i32) -> (i32, i32) {
    %c0_i32 = arith.constant 0 : i32
    return %arg0, %arg1 : i32, i32
  }
  func.func @transform_1(%arg0: i32, %arg1: i32) -> (i32, i32) {
    %c0_i32 = arith.constant 0 : i32
    %c0_i32_0 = arith.constant 0 : i32
    return %arg0, %c0_i32 : i32, i32
  }
  func.func @transform_2(%arg0: i32, %arg1: i32) -> (i32, i32) {
    %c0_i32 = arith.constant 0 : i32
    return %arg0, %arg1 : i32, i32
  }
}

</mosaic_0001>

<llo_original>
// kernel: tpu_custom_call.1
$region0: #{tpu_custom_call.1}
  #allocation0 [shape = 'u32[]', space=smem, size = 0x4, offset = 0x4, fixed_abs, tag = 'smem constant byte address 0x4 - core index']
  #allocation1 [shape = 'u32[72,128]{1,0:T(1,128)}', space=vmem, size = 0x9000, scoped, tag = 'internal scratch']
  %s0 = inlined_call_operand.hbm [shape: f32[8,256], index: 0, kind: input, shape index: {}]
  %s1 = inlined_call_operand.vmem [shape: f32[8,3], index: 1, kind: input, shape index: {}]
  %s2 = inlined_call_operand.hbm [shape: f32[8,256], index: 2, kind: output, shape index: {}]
  %s3 = sld [smem:[#allocation0]]
  $region45: #{tpu_custom_call.1} parent=0
    _
  %s5 = ssub.s32 1, %s3
  %s6 = scalar_select 0, %s5, %s3
  $region1: #{tpu_custom_call.1} parent=0
    #allocation2 [shape = 'u8[8192]{0}', space=vmem, size = 0x2000, scoped, tag = 'input window, operand 0']
    #allocation3 [shape = 's32[2]{0}', space=sflag, size = 0x8, scoped, tag = 'scoped memory for tpu_custom_call.1']
    #allocation4 [shape = 's32[2]{0}', space=sflag, size = 0x8, scoped, tag = 'scoped memory for tpu_custom_call.1']
    #allocation5 [shape = 'u8[8192]{0}', space=vmem, size = 0x2000, scoped, tag = 'output window, operand 0']
    %7 = vsyncpa [#allocation3], 0
    %s8 = scalar_lea.sflag [#allocation3], 1
    %9 = vsyncpa %s8, 0
    %10 = vsyncpa [#allocation4], 0
    %s11 = scalar_lea.sflag [#allocation4], 1
    %12 = vsyncpa %s11, 0
    loop: start=0, step=1, limit=4
    $region2: #{tpu_custom_call.1} parent=1 // loop_pre_header
      _
    $region3: #{tpu_custom_call.1} parent=1 // loop_header
      %s14 = sphi 0, %s18
      %p15 = scmp.ge.s32.totalorder %s14, 4
      %s21 = sphi 0, %s33
      %s22 = sphi 0, %s29
      %s23 = sphi 0, %s21
      %s24 = sphi 0, %s22
      %s25 = sphi 0, %s23
      %s26 = sphi 0, %s24
      %s38 = sphi 0, %s40
      %s41 = sphi 0, %s38
      %s42 = sphi 0, %s41
      %s58 = sphi 0, %s42
      %s64 = sphi 0, %s66
      %s67 = sphi 0, %s64
      %s68 = sphi 0, %s67
      %s84 = sphi 0, %s68
      %s92 = sphi 0, %s94
      %s95 = sphi 0, %s92
      %s96 = sphi 0, %s95
      %s112 = sphi 0, %s96
    $region4: #{tpu_custom_call.1} parent=1 // loop_header_branch
      %17 = sbr.rel (%p15) target = $region8
    $region5: #{tpu_custom_call.1} parent=1 // loop_body
      %s19 = ssub.s32 %s14, 1
      %s20 = ssub.s32 %s14, 2
      %s27 = sadd.s32 1, %s22
      %p28 = scmp.ge.s32.totalorder %s27, 2
      %s29 = scalar_select %p28, 0, %s27
      %s30 = sadd.s32 1, %s21
      %s31 = scalar_select %p28, %s30, %s21
      %p32 = scmp.ge.s32.totalorder %s31, 1
      %s33 = scalar_select %p32, 0, %s31
      %s34 = ssub.s32 %s21, %s33
      %s35 = ssub.s32 %s22, %s29
      %s36 = sor.u32 %s34, %s35
      %p37 = scmp.eq.s32.totalorder %s36, 0
      %s39 = sadd.s32 %s38, 1
      %s40 = scalar_select %p37, %s38, %s39
      %p43 = pneg %p37
      %p44 = scmp.eq.s32.totalorder %s14, 1
      %p45 = por %p43, %p44
      %p46 = scmp.ne.s32.totalorder %s38, %s41
      %p47 = scmp.eq.s32.totalorder %s14, 0
      %p48 = por %p46, %p47
      %p49 = scmp.ne.s32.totalorder %s38, %s41
      %p50 = scmp.eq.s32.totalorder %s19, 1
      %p51 = por %p49, %p50
      %p52 = scmp.ne.s32.totalorder %s41, %s42
      %p53 = scmp.eq.s32.totalorder %s19, 0
      %p54 = por %p52, %p53
      %p55 = scmp.ne.s32.totalorder %s41, %s42
      %p56 = scmp.eq.s32.totalorder %s20, 1
      %p57 = por %p55, %p56
      %p59 = scmp.ne.s32.totalorder %s42, %s58
      %p60 = scmp.eq.s32.totalorder %s20, 0
      %p61 = por %p59, %p60
      %s62 = ssub.s32 %s21, %s33
      %p63 = scmp.eq.s32.totalorder %s62, 0
      %s65 = sadd.s32 %s64, 1
      %s66 = scalar_select %p63, %s64, %s65
      %p69 = pneg %p63
      %p70 = scmp.eq.s32.totalorder %s14, 1
      %p71 = por %p69, %p70
      %p72 = scmp.ne.s32.totalorder %s64, %s67
      %p73 = scmp.eq.s32.totalorder %s14, 0
      %p74 = por %p72, %p73
      %p75 = scmp.ne.s32.totalorder %s64, %s67
      %p76 = scmp.eq.s32.totalorder %s19, 1
      %p77 = por %p75, %p76
      %p78 = scmp.ne.s32.totalorder %s67, %s68
      %p79 = scmp.eq.s32.totalorder %s19, 0
      %p80 = por %p78, %p79
      %p81 = scmp.ne.s32.totalorder %s67, %s68
      %p82 = scmp.eq.s32.totalorder %s20, 1
      %p83 = por %p81, %p82
      %p85 = scmp.ne.s32.totalorder %s68, %s84
      %p86 = scmp.eq.s32.totalorder %s20, 0
      %p87 = por %p85, %p86
      %s88 = ssub.s32 %s21, %s33
      %s89 = ssub.s32 %s22, %s29
      %s90 = sor.u32 %s88, %s89
      %p91 = scmp.eq.s32.totalorder %s90, 0
      %s93 = sadd.s32 %s92, 1
      %s94 = scalar_select %p91, %s92, %s93
      %p97 = pneg %p91
      %p98 = scmp.eq.s32.totalorder %s14, 1
      %p99 = por %p97, %p98
      %p100 = scmp.ne.s32.totalorder %s92, %s95
      %p101 = scmp.eq.s32.totalorder %s14, 0
      %p102 = por %p100, %p101
      %p103 = scmp.ne.s32.totalorder %s92, %s95
      %p104 = scmp.eq.s32.totalorder %s19, 1
      %p105 = por %p103, %p104
      %p106 = scmp.ne.s32.totalorder %s95, %s96
      %p107 = scmp.eq.s32.totalorder %s19, 0
      %p108 = por %p106, %p107
      %p109 = scmp.ne.s32.totalorder %s95, %s96
      %p110 = scmp.eq.s32.totalorder %s20, 1
      %p111 = por %p109, %p110
      %p113 = scmp.ne.s32.totalorder %s96, %s112
      %p114 = scmp.eq.s32.totalorder %s20, 0
      %p115 = por %p113, %p114
      %p116 = scmp.le.s32.totalorder 1, %s14
      %p117 = scmp.lt.s32.totalorder %s14, 3
      %p118 = pnand %p116, %p117
      %p119 = pneg %p118
      // Predicated region
      $region9: #{tpu_custom_call.1} parent=5 // pred_check
        _
      $region10: #{tpu_custom_call.1} parent=5 // pred_check_branch
        %121 = sbr.rel (%p118) target = $region12
      $region11: #{tpu_custom_call.1} parent=5 // pred_region
        %s122 = ssub.s32 %s14, 1
        // Predicated region
        $region13: #{tpu_custom_call.1} parent=11 // pred_check
          %p123 = pneg %p80
        $region14: #{tpu_custom_call.1} parent=11 // pred_check_branch
          %125 = sbr.rel (%p123) target = $region16
        $region15: #{tpu_custom_call.1} parent=11 // pred_region
          %p126 = scmp.lt.s32.totalorder %s23, 0
          %s127 = scalar_select %p126, %s23, 0
          %s128 = smul.addr %s127, 8
          %s129 = scalar_lea.vmem %s1, %s128
        $region16: #{tpu_custom_call.1} parent=11 // pred_fallthru
          _
      $region12: #{tpu_custom_call.1} parent=5 // pred_fallthru
        _
      %p130 = scmp.lt.s32.totalorder %s14, 2
      // Predicated region
      $region17: #{tpu_custom_call.1} parent=5 // pred_check
        %p131 = pneg %p130
      $region18: #{tpu_custom_call.1} parent=5 // pred_check_branch
        %133 = sbr.rel (%p131) target = $region20
      $region19: #{tpu_custom_call.1} parent=5 // pred_region
        // Predicated region
        $region21: #{tpu_custom_call.1} parent=19 // pred_check
          %p134 = pneg %p48
        $region22: #{tpu_custom_call.1} parent=19 // pred_check_branch
          %136 = sbr.rel (%p134) target = $region24
        $region23: #{tpu_custom_call.1} parent=19 // pred_region
          %s137 = sand.u32 %s38, 1
          %s138 = scalar_lea.sflag [#allocation3], %s137
          %s139 = sand.u32 %s38, 1
          %s140 = smul.addr %s139, 8
          %s141 = scalar_lea.vmem [#allocation2], %s140
          %143 = vsyncadd %s138, 0
          %s144 = smul.addr %s21, 2
          %s145 = sadd.s32 %s22, %s144
          %s146 = smul.addr %s145, 8
          %s147 = scalar_lea.hbm %s0, %s146
          %s149 = sshll.u32 %s147, 4
          %s150 = int_to_ptr.hbm [resolvable:$true] %s149
          %s151 = sshll.u32 %s141, 4
          %s152 = int_to_ptr.vmem [resolvable:$true] %s151
          %154 = dma.hbm_to_vmem [thread:$0]  %s150, 128, %s152, %s138
        $region24: #{tpu_custom_call.1} parent=19 // pred_fallthru
          _
      $region20: #{tpu_custom_call.1} parent=5 // pred_fallthru
        _
      %p155 = scmp.le.s32.totalorder 1, %s14
      %p156 = scmp.lt.s32.totalorder %s14, 3
      %p157 = pnand %p155, %p156
      %p158 = pneg %p157
      // Predicated region
      $region25: #{tpu_custom_call.1} parent=5 // pred_check
        _
      $region26: #{tpu_custom_call.1} parent=5 // pred_check_branch
        %160 = sbr.rel (%p157) target = $region28
      $region27: #{tpu_custom_call.1} parent=5 // pred_region
        %s161 = ssub.s32 %s14, 1
        %s162 = sand.u32 %s41, 1
        %s163 = scalar_lea.sflag [#allocation3], %s162
        %s164 = sand.u32 %s41, 1
        %s165 = smul.addr %s164, 8
        %s166 = scalar_lea.vmem [#allocation2], %s165
        // Predicated region
        $region29: #{tpu_custom_call.1} parent=27 // pred_check
          %p167 = pneg %p54
        $region30: #{tpu_custom_call.1} parent=27 // pred_check_branch
          %169 = sbr.rel (%p167) target = $region32
        $region31: #{tpu_custom_call.1} parent=27 // pred_region
          %171 = dma.done %s163, 128
        $region32: #{tpu_custom_call.1} parent=27 // pred_fallthru
          _
        %s172 = sand.u32 %s41, 1
        %s173 = scalar_lea.sflag [#allocation3], %s172
        %s174 = sand.u32 %s41, 1
        %s175 = smul.addr %s174, 8
        %s176 = scalar_lea.vmem [#allocation2], %s175
        %p177 = pneg %p54
        %p178 = pneg %p51
        %p179 = scmp.lt.s32.totalorder %s23, 0
        %s180 = scalar_select %p179, %s23, 0
        %s181 = smul.addr %s180, 8
        %s182 = scalar_lea.vmem %s1, %s181
        %p183 = pneg %p80
        %p184 = pneg %p77
        %p185 = pneg %p108
        %p186 = pneg %p105
        %s187 = sand.u32 %s95, 1
        %s188 = scalar_lea.sflag [#allocation4], %s187
        %s189 = sand.u32 %s95, 1
        %s190 = smul.addr %s189, 8
        %s191 = scalar_lea.vmem [#allocation5], %s190
        %p192 = scmp.lt.s32.totalorder %s23, 0
        %s193 = scalar_select %p192, %s23, 0
        %s194 = smul.addr %s193, 8
        %s195 = scalar_lea.vmem %s1, %s194
        %v196 = vld [vmem:[%s166] sm:$0xff]
        %v197 = vld [vmem:[%s195] sm:$0xff]
        %199 = vset.pattern.permute.xlu0 0
        %200 = vperm.xlu0 %199, %v197
        %v201 = vpop.permute.xlu0 %200
        %v203 = vmul.f32 %v196, %v201
        %204 = vset.pattern.permute.xlu0 1
        %205 = vperm.xlu0 %204, %v197
        %v206 = vpop.permute.xlu0 %205
        %v208 = vadd.f32 %v203, %v206
        %v209 = vtanh.pop %v208
        %210 = vset.pattern.permute.xlu0 2
        %211 = vperm.xlu0 %210, %v197
        %v212 = vpop.permute.xlu0 %211
        %v214 = vmul.f32 %v209, %v212
        %v215 = vadd.f32 %v208, %v214
        %216 = vst [vmem:[%s191] sm:$0xff] %v215
        %s217 = sand.u32 %s95, 1
        %s218 = scalar_lea.sflag [#allocation4], %s217
        %s219 = sand.u32 %s95, 1
        %s220 = smul.addr %s219, 8
        %s221 = scalar_lea.vmem [#allocation5], %s220
        // Predicated region
        $region33: #{tpu_custom_call.1} parent=27 // pred_check
          %p222 = pneg %p105
        $region34: #{tpu_custom_call.1} parent=27 // pred_check_branch
          %224 = sbr.rel (%p222) target = $region36
        $region35: #{tpu_custom_call.1} parent=27 // pred_region
          %226 = vsyncadd %s218, 0
          %s227 = smul.addr %s23, 2
          %s228 = sadd.s32 %s24, %s227
          %s229 = smul.addr %s228, 8
          %s230 = scalar_lea.hbm %s2, %s229
          %s232 = sshll.u32 %s221, 4
          %s233 = int_to_ptr.vmem [resolvable:$true] %s232
          %s234 = sshll.u32 %s230, 4
          %s235 = int_to_ptr.hbm [resolvable:$true] %s234
          %237 = dma.vmem_to_hbm [thread:$0]  %s233, 128, %s235, %s218
        $region36: #{tpu_custom_call.1} parent=27 // pred_fallthru
          _
      $region28: #{tpu_custom_call.1} parent=5 // pred_fallthru
        _
      %p238 = scmp.le.s32.totalorder 2, %s14
      // Predicated region
      $region37: #{tpu_custom_call.1} parent=5 // pred_check
        %p239 = pneg %p238
      $region38: #{tpu_custom_call.1} parent=5 // pred_check_branch
        %241 = sbr.rel (%p239) target = $region40
      $region39: #{tpu_custom_call.1} parent=5 // pred_region
        %s242 = ssub.s32 %s14, 2
        // Predicated region
        $region41: #{tpu_custom_call.1} parent=39 // pred_check
          %p243 = pneg %p111
        $region42: #{tpu_custom_call.1} parent=39 // pred_check_branch
          %245 = sbr.rel (%p243) target = $region44
        $region43: #{tpu_custom_call.1} parent=39 // pred_region
          %s246 = sand.u32 %s96, 1
          %s247 = scalar_lea.sflag [#allocation4], %s246
          %s248 = sand.u32 %s96, 1
          %s249 = smul.addr %s248, 8
          %s250 = scalar_lea.vmem [#allocation5], %s249
          %252 = dma.done %s247, 128
        $region44: #{tpu_custom_call.1} parent=39 // pred_fallthru
          _
      $region40: #{tpu_custom_call.1} parent=5 // pred_fallthru
        _
    $region6: #{tpu_custom_call.1} parent=1 // loop_footer
      %s18 = sadd.s32 1, %s14
    $region7: #{tpu_custom_call.1} parent=1 // loop_footer_branch
      %13 = sbr.rel target = $region3
    $region8: #{tpu_custom_call.1} parent=1 // loop_exit
      _
    %253 = vsyncpa [#allocation3], 1
    %s254 = scalar_lea.sflag [#allocation3], 1
    %255 = vsyncpa %s254, 1
    %256 = vsyncpa [#allocation4], 1
    %s257 = scalar_lea.sflag [#allocation4], 1
    %258 = vsyncpa %s257, 1

</llo_original>
